<compile_context>
chip_gen: v6e
topology: v6e:2x2x1
jax: 0.10.0
libtpu: 0.0.40
codegen_flags: <defaults>
</compile_context>

<pallas_src>
import jax
import jax.numpy as jnp
from jax.experimental import pallas as pl
from jax.experimental.pallas import tpu as pltpu

BN_EPS = 1e-5
NUM_CLASSES = 10
LANE = 128
MXU_DTYPE = jnp.bfloat16  # MXU input dtype; accumulation stays f32.


def _round_up(n, m):
    return ((n + m - 1) // m) * m


# ----------------------------------------------------------------------------
# Fused kernel: [Linear -> BN(train) -> ReLU] x num_hidden -> Linear
# One grid step = one micro-batch (B_TILE rows); weights stay VMEM-resident.
# ----------------------------------------------------------------------------
def _build_fused_kernel(num_hidden):
    def kernel(*refs):
        # refs layout:
        #   x_ref,
        #   (w_ref, gamma_ref, beta_ref) x num_hidden,
        #   w_out_ref, b_out_ref,
        #   logits_ref (output)
        x_ref = refs[0]
        w_out_ref = refs[1 + 3 * num_hidden]
        b_out_ref = refs[2 + 3 * num_hidden]
        logits_ref = refs[3 + 3 * num_hidden]

        h = x_ref[...]  # (B_TILE, K) f32
        for l in range(num_hidden):
            w_ref = refs[1 + 3 * l]        # (Din, H_pad) bf16
            gamma_ref = refs[2 + 3 * l]    # (1, H_pad) f32
            beta_ref = refs[3 + 3 * l]     # (1, H_pad) f32

            # Linear (pre-BN bias folded out: training-mode BN cancels it).
            z = jnp.dot(h.astype(MXU_DTYPE), w_ref[...],
                        preferred_element_type=jnp.float32)

            # BatchNorm1d training stats; 1/B folded into the (1,H) vector math.
            inv_b = 1.0 / z.shape[0]
            mean = jnp.sum(z, axis=0, keepdims=True) * inv_b
            zc = z - mean                                   # centered (robust var)
            var = jnp.sum(zc * zc, axis=0, keepdims=True) * inv_b

            # Fused normalize + affine + ReLU: one mul + one add per element.
            scale = gamma_ref[...] * jax.lax.rsqrt(var + BN_EPS)   # EUP
            h = jnp.maximum(zc * scale + beta_ref[...], 0.0)

        # Final classifier layer (bias kept; no BN after it).
        logits = jnp.dot(h.astype(MXU_DTYPE), w_out_ref[...],
                         preferred_element_type=jnp.float32) + b_out_ref[...]
        logits_ref[...] = logits  # lane-dense (B_TILE, 128) store

    return kernel


def fused_mlp(x, hidden_params, w_out, b_out):
    """x: (num_batches, B_TILE, K) f32.
    hidden_params: list of (w_pad bf16, gamma_pad f32, beta_pad f32)."""
    num_hidden = len(hidden_params)
    nb, bt, k = x.shape
    c_pad = w_out.shape[1]

    flat_inputs = [x]
    in_specs = [pl.BlockSpec((None, bt, k), lambda i: (i, 0, 0))]
    param_bytes = 0
    flops = 0
    for w, g, bta in hidden_params:
        flat_inputs += [w, g, bta]
        in_specs += [pl.BlockSpec(w.shape, lambda i: (0, 0)),
                     pl.BlockSpec(g.shape, lambda i: (0, 0)),
                     pl.BlockSpec(bta.shape, lambda i: (0, 0))]
        param_bytes += w.size * 2 + g.size * 4 + bta.size * 4
        flops += 2 * nb * bt * w.shape[0] * w.shape[1]
    flat_inputs += [w_out, b_out]
    in_specs += [pl.BlockSpec(w_out.shape, lambda i: (0, 0)),
                 pl.BlockSpec(b_out.shape, lambda i: (0, 0))]
    param_bytes += w_out.size * 2 + b_out.size * 4
    flops += 2 * nb * bt * w_out.shape[0] * w_out.shape[1]

    out_specs = pl.BlockSpec((None, bt, c_pad), lambda i: (i, 0, 0))

    cost = pl.CostEstimate(
        flops=int(flops),
        transcendentals=int(nb * num_hidden * c_pad),
        bytes_accessed=int(x.size * 4 + param_bytes + nb * bt * c_pad * 4),
    )

    return pl.pallas_call(
        _build_fused_kernel(num_hidden),
        out_shape=jax.ShapeDtypeStruct((nb, bt, c_pad), jnp.float32),
        grid=(nb,),
        in_specs=in_specs,
        out_specs=out_specs,
        compiler_params=pltpu.CompilerParams(
            dimension_semantics=("parallel",)),
        cost_estimate=cost,
    )(*flat_inputs)


# ----------------------------------------------------------------------------
# Parameter construction (mirrors MLP.__init__; weights stored (in, out))
# ----------------------------------------------------------------------------
def _etf_matrix(n):
    w = jnp.sqrt(jnp.asarray(n / (n - 1.0))) * (
        jnp.eye(n) - (1.0 / n) * jnp.ones((n, n)))
    w = w / jnp.sqrt((1.0 / n) * jnp.sum(w * w))
    return w


def init_mlp_params(key, L, H, num_etf=0):
    dims_in = [784] + [H] * (L - 2)  # L-1 hidden linear layers
    params = {"fcs": [], "bns": [], "fc_out": None}
    for din in dims_in:
        key, kw, kb = jax.random.split(key, 3)
        bound = 1.0 / jnp.sqrt(din)
        w = jax.random.uniform(kw, (din, H), jnp.float32, -bound, bound)
        b = jax.random.uniform(kb, (1, H), jnp.float32, -bound, bound)
        params["fcs"].append((w, b))  # b kept for parity; cancelled by BN in fwd
        params["bns"].append((jnp.ones((1, H), jnp.float32),
                              jnp.zeros((1, H), jnp.float32)))

    key, kw, kb = jax.random.split(key, 3)
    bound = 1.0 / jnp.sqrt(H)
    w_out = jax.random.uniform(kw, (H, NUM_CLASSES), jnp.float32, -bound, bound)
    b_out = jax.random.uniform(kb, (1, NUM_CLASSES), jnp.float32, -bound, bound)

    if num_etf > 0:
        w_etf = _etf_matrix(NUM_CLASSES) @ jnp.eye(NUM_CLASSES, H)  # (10, H)
        w_out = w_etf.T                                             # (H, 10)
    for i in range(1, num_etf):
        w_hh = _etf_matrix(H)                                       # (H, H)
        _, b_old = params["fcs"][L - 1 - i]
        params["fcs"][L - 1 - i] = (w_hh.T, b_old)

    params["fc_out"] = (w_out, b_out)
    return params


def prepare_padded_params(params):
    """Zero-pad output lane dims to multiples of 128, cast matmul weights to bf16.
    First-layer input dim (784) is NOT padded (contraction dim needs no 128 pad)."""
    hidden = []
    for idx, ((w, _b), (gamma, beta)) in enumerate(zip(params["fcs"],
                                                       params["bns"])):
        din, dout = w.shape
        din_p = din if idx == 0 else _round_up(din, LANE)  # match padded activation
        dout_p = _round_up(dout, LANE)
        w_p = jnp.zeros((din_p, dout_p), jnp.float32).at[:din, :dout].set(w)
        g_p = jnp.ones((1, dout_p), jnp.float32).at[:, :dout].set(gamma)
        b_p = jnp.zeros((1, dout_p), jnp.float32).at[:, :dout].set(beta)
        hidden.append((w_p.astype(MXU_DTYPE), g_p, b_p))

    w_out, b_out = params["fc_out"]
    h_dim, c_dim = w_out.shape
    h_p, c_p = _round_up(h_dim, LANE), _round_up(c_dim, LANE)
    w_out_p = jnp.zeros((h_p, c_p), jnp.float32).at[:h_dim, :c_dim].set(w_out)
    b_out_p = jnp.zeros((1, c_p), jnp.float32).at[:, :c_dim].set(b_out)

    return {"hidden": hidden,
            "w_out": w_out_p.astype(MXU_DTYPE),
            "b_out": b_out_p}


# ----------------------------------------------------------------------------
# Forward passes (match MLP.forward: returns (logits, argmax))
# ----------------------------------------------------------------------------
@jax.jit
def mlp_forward(padded_params, X):
    """Whole batch = one micro-batch: BN stats over the full batch (PyTorch parity)."""
    x = X.reshape(-1, 784).astype(jnp.float32)
    logits_pad = fused_mlp(x[None], padded_params["hidden"],
                           padded_params["w_out"], padded_params["b_out"])
    logits = logits_pad[0, :, :NUM_CLASSES]
    pred = jnp.argmax(logits, axis=1)  # tiny; done in plain XLA per perf review
    return logits, pred


@jax.jit
def mlp_forward_microbatched(padded_params, X_stream):
    """X_stream: (num_batches, micro_batch, ...). One grid step per micro-batch
    (BN per micro-batch == calling the PyTorch forward once per micro-batch);
    weights stay VMEM-resident across the grid; batch axis is 'parallel'."""
    nb = X_stream.shape[0]
    x = X_stream.reshape(nb, -1, 784).astype(jnp.float32)
    logits_pad = fused_mlp(x, padded_params["hidden"],
                           padded_params["w_out"], padded_params["b_out"])
    logits = logits_pad[..., :NUM_CLASSES]
    pred = jnp.argmax(logits, axis=-1)
    return logits, pred


# ----------------------------------------------------------------------------
# Pure-JAX reference (same bf16-input / f32-accumulate numerics) for checking
# ----------------------------------------------------------------------------
def _reference_forward(padded_params, x_f32):
    h = x_f32
    for w, g, b in padded_params["hidden"]:
        z = jnp.dot(h.astype(MXU_DTYPE).astype(jnp.float32),
                    w.astype(jnp.float32))
        mean = jnp.mean(z, axis=0, keepdims=True)
        zc = z - mean
        var = jnp.mean(zc * zc, axis=0, keepdims=True)
        h = jnp.maximum(zc * (g * jax.lax.rsqrt(var + BN_EPS)) + b, 0.0)
    logits = jnp.dot(h.astype(MXU_DTYPE).astype(jnp.float32),
                     padded_params["w_out"].astype(jnp.float32)) \
             + padded_params["b_out"]
    return logits[:, :NUM_CLASSES]


if __name__ == "__main__":
    L, H = 3, 32          # 2 hidden linear layers (784->H, H->H) + fc_out
    B = 8
    key = jax.random.PRNGKey(0)
    key, kx, kp, kd = jax.random.split(key, 4)

    X = jax.random.normal(kx, (B, 1, 28, 28), jnp.float32)   # NCHW input
    params = init_mlp_params(kp, L, H, num_etf=0)
    padded_params = prepare_padded_params(params)

    # --- single-batch path (exact PyTorch forward semantics) ---
    logits, pred = mlp_forward(padded_params, X)
    jax.block_until_ready((logits, pred))
    assert logits.shape == (B, NUM_CLASSES)
    assert pred.shape == (B,)
    assert bool(jnp.all(pred >= 0)) and bool(jnp.all(pred < NUM_CLASSES))
    assert bool(jnp.all(jnp.isfinite(logits)))

    ref = _reference_forward(padded_params, X.reshape(-1, 784).astype(jnp.float32))
    assert bool(jnp.allclose(logits, ref, rtol=2e-2, atol=2e-2)), \
        "kernel logits diverge from reference"

    # --- micro-batched path: grid>1, resident weights, parallel batch axis ---
    NB = 4
    X_stream = jax.random.normal(kd, (NB, B, 784), jnp.float32)
    lg_mb, pred_mb = mlp_forward_microbatched(padded_params, X_stream)
    jax.block_until_ready((lg_mb, pred_mb))
    assert lg_mb.shape == (NB, B, NUM_CLASSES)
    assert pred_mb.shape == (NB, B)
    assert bool(jnp.all(jnp.isfinite(lg_mb)))

    # Consistency: micro-batch 0 must match the single-batch path on that chunk.
    lg0, _ = mlp_forward(padded_params, X_stream[0])
    assert bool(jnp.allclose(lg_mb[0], lg0, rtol=1e-4, atol=1e-4))

    print("KERNEL_OK")
</pallas_src>

<mosaic_0001>
module attributes {stable_mosaic.version = 11 : i64} {
  func.func @kernel(%arg0: i32, %arg1: memref<1x8x784xf32, #tpu.memory_space<vmem>>, %arg2: memref<784x128xbf16, #tpu.memory_space<vmem>>, %arg3: memref<1x128xf32, #tpu.memory_space<vmem>>, %arg4: memref<1x128xf32, #tpu.memory_space<vmem>>, %arg5: memref<128x128xbf16, #tpu.memory_space<vmem>>, %arg6: memref<1x128xf32, #tpu.memory_space<vmem>>, %arg7: memref<1x128xf32, #tpu.memory_space<vmem>>, %arg8: memref<128x128xbf16, #tpu.memory_space<vmem>>, %arg9: memref<1x128xf32, #tpu.memory_space<vmem>>, %arg10: memref<1x8x128xf32, #tpu.memory_space<vmem>>) attributes {dimension_semantics = [#tpu.dimension_semantics<parallel>], iteration_bounds = array<i64: 1>, scalar_prefetch = 0 : i64, scratch_operands = 0 : i64, tpu.core_type = #tpu.core_type<tc>, window_params = [{transform_indices = @transform_0, window_bounds = array<i64: 1, 8, 784>}, {pipeline_mode = #tpu.pipeline_mode<synchronous>, transform_indices = @transform_1, window_bounds = array<i64: 784, 128>}, {pipeline_mode = #tpu.pipeline_mode<synchronous>, transform_indices = @transform_2, window_bounds = array<i64: 1, 128>}, {pipeline_mode = #tpu.pipeline_mode<synchronous>, transform_indices = @transform_3, window_bounds = array<i64: 1, 128>}, {pipeline_mode = #tpu.pipeline_mode<synchronous>, transform_indices = @transform_4, window_bounds = array<i64: 128, 128>}, {pipeline_mode = #tpu.pipeline_mode<synchronous>, transform_indices = @transform_5, window_bounds = array<i64: 1, 128>}, {pipeline_mode = #tpu.pipeline_mode<synchronous>, transform_indices = @transform_6, window_bounds = array<i64: 1, 128>}, {pipeline_mode = #tpu.pipeline_mode<synchronous>, transform_indices = @transform_7, window_bounds = array<i64: 128, 128>}, {pipeline_mode = #tpu.pipeline_mode<synchronous>, transform_indices = @transform_8, window_bounds = array<i64: 1, 128>}, {transform_indices = @transform_9, window_bounds = array<i64: 1, 8, 128>}]} {
    %c0 = arith.constant 0 : index
    %c0_0 = arith.constant 0 : index
    %c0_1 = arith.constant 0 : index
    %0 = vector.load %arg1[%c0, %c0_0, %c0_1] : memref<1x8x784xf32, #tpu.memory_space<vmem>>, vector<1x8x784xf32>
    %1 = vector.shape_cast %0 : vector<1x8x784xf32> to vector<8x784xf32>
    %2 = arith.truncf %1 : vector<8x784xf32> to vector<8x784xbf16>
    %c0_2 = arith.constant 0 : index
    %c0_3 = arith.constant 0 : index
    %3 = vector.load %arg2[%c0_2, %c0_3] : memref<784x128xbf16, #tpu.memory_space<vmem>>, vector<784x128xbf16>
    %cst = arith.constant dense<0.000000e+00> : vector<8x128xf32>
    %4 = tpu.matmul %2, %3, %cst {dimension_numbers = #tpu.dot_dimension_numbers<[1], [0], [0], [1], [0, 0, 1, 1], [], []>} : vector<8x784xbf16>, vector<784x128xbf16>, vector<8x128xf32> -> vector<8x128xf32>
    %cst_4 = arith.constant dense<0.000000e+00> : vector<128xf32>
    %5 = vector.multi_reduction <add>, %4, %cst_4 [0] : vector<8x128xf32> to vector<128xf32>
    %6 = vector.shape_cast %5 : vector<128xf32> to vector<1x128xf32>
    %cst_5 = arith.constant 1.250000e-01 : f32
    %7 = vector.broadcast %cst_5 : f32 to vector<1x128xf32>
    %8 = arith.mulf %6, %7 : vector<1x128xf32>
    %9 = vector.broadcast %8 : vector<1x128xf32> to vector<8x128xf32>
    %10 = arith.subf %4, %9 : vector<8x128xf32>
    %11 = arith.mulf %10, %10 : vector<8x128xf32>
    %cst_6 = arith.constant dense<0.000000e+00> : vector<128xf32>
    %12 = vector.multi_reduction <add>, %11, %cst_6 [0] : vector<8x128xf32> to vector<128xf32>
    %13 = vector.shape_cast %12 : vector<128xf32> to vector<1x128xf32>
    %cst_7 = arith.constant 1.250000e-01 : f32
    %14 = vector.broadcast %cst_7 : f32 to vector<1x128xf32>
    %15 = arith.mulf %13, %14 : vector<1x128xf32>
    %c0_8 = arith.constant 0 : index
    %c0_9 = arith.constant 0 : index
    %16 = vector.load %arg3[%c0_8, %c0_9] : memref<1x128xf32, #tpu.memory_space<vmem>>, vector<1x128xf32>
    %cst_10 = arith.constant 9.99999974E-6 : f32
    %17 = vector.broadcast %cst_10 : f32 to vector<1x128xf32>
    %18 = arith.addf %15, %17 : vector<1x128xf32>
    %19 = math.rsqrt %18 : vector<1x128xf32>
    %20 = arith.mulf %16, %19 : vector<1x128xf32>
    %21 = vector.broadcast %20 : vector<1x128xf32> to vector<8x128xf32>
    %22 = arith.mulf %10, %21 : vector<8x128xf32>
    %c0_11 = arith.constant 0 : index
    %c0_12 = arith.constant 0 : index
    %23 = vector.load %arg4[%c0_11, %c0_12] : memref<1x128xf32, #tpu.memory_space<vmem>>, vector<1x128xf32>
    %24 = vector.broadcast %23 : vector<1x128xf32> to vector<8x128xf32>
    %25 = arith.addf %22, %24 : vector<8x128xf32>
    %cst_13 = arith.constant 0.000000e+00 : f32
    %26 = vector.broadcast %cst_13 : f32 to vector<8x128xf32>
    %27 = arith.maximumf %25, %26 : vector<8x128xf32>
    %28 = arith.truncf %27 : vector<8x128xf32> to vector<8x128xbf16>
    %c0_14 = arith.constant 0 : index
    %c0_15 = arith.constant 0 : index
    %29 = vector.load %arg5[%c0_14, %c0_15] : memref<128x128xbf16, #tpu.memory_space<vmem>>, vector<128x128xbf16>
    %cst_16 = arith.constant dense<0.000000e+00> : vector<8x128xf32>
    %30 = tpu.matmul %28, %29, %cst_16 {dimension_numbers = #tpu.dot_dimension_numbers<[1], [0], [0], [1], [0, 0, 1, 1], [], []>} : vector<8x128xbf16>, vector<128x128xbf16>, vector<8x128xf32> -> vector<8x128xf32>
    %cst_17 = arith.constant dense<0.000000e+00> : vector<128xf32>
    %31 = vector.multi_reduction <add>, %30, %cst_17 [0] : vector<8x128xf32> to vector<128xf32>
    %32 = vector.shape_cast %31 : vector<128xf32> to vector<1x128xf32>
    %cst_18 = arith.constant 1.250000e-01 : f32
    %33 = vector.broadcast %cst_18 : f32 to vector<1x128xf32>
    %34 = arith.mulf %32, %33 : vector<1x128xf32>
    %35 = vector.broadcast %34 : vector<1x128xf32> to vector<8x128xf32>
    %36 = arith.subf %30, %35 : vector<8x128xf32>
    %37 = arith.mulf %36, %36 : vector<8x128xf32>
    %cst_19 = arith.constant dense<0.000000e+00> : vector<128xf32>
    %38 = vector.multi_reduction <add>, %37, %cst_19 [0] : vector<8x128xf32> to vector<128xf32>
    %39 = vector.shape_cast %38 : vector<128xf32> to vector<1x128xf32>
    %cst_20 = arith.constant 1.250000e-01 : f32
    %40 = vector.broadcast %cst_20 : f32 to vector<1x128xf32>
    %41 = arith.mulf %39, %40 : vector<1x128xf32>
    %c0_21 = arith.constant 0 : index
    %c0_22 = arith.constant 0 : index
    %42 = vector.load %arg6[%c0_21, %c0_22] : memref<1x128xf32, #tpu.memory_space<vmem>>, vector<1x128xf32>
    %cst_23 = arith.constant 9.99999974E-6 : f32
    %43 = vector.broadcast %cst_23 : f32 to vector<1x128xf32>
    %44 = arith.addf %41, %43 : vector<1x128xf32>
    %45 = math.rsqrt %44 : vector<1x128xf32>
    %46 = arith.mulf %42, %45 : vector<1x128xf32>
    %47 = vector.broadcast %46 : vector<1x128xf32> to vector<8x128xf32>
    %48 = arith.mulf %36, %47 : vector<8x128xf32>
    %c0_24 = arith.constant 0 : index
    %c0_25 = arith.constant 0 : index
    %49 = vector.load %arg7[%c0_24, %c0_25] : memref<1x128xf32, #tpu.memory_space<vmem>>, vector<1x128xf32>
    %50 = vector.broadcast %49 : vector<1x128xf32> to vector<8x128xf32>
    %51 = arith.addf %48, %50 : vector<8x128xf32>
    %cst_26 = arith.constant 0.000000e+00 : f32
    %52 = vector.broadcast %cst_26 : f32 to vector<8x128xf32>
    %53 = arith.maximumf %51, %52 : vector<8x128xf32>
    %54 = arith.truncf %53 : vector<8x128xf32> to vector<8x128xbf16>
    %c0_27 = arith.constant 0 : index
    %c0_28 = arith.constant 0 : index
    %55 = vector.load %arg8[%c0_27, %c0_28] : memref<128x128xbf16, #tpu.memory_space<vmem>>, vector<128x128xbf16>
    %cst_29 = arith.constant dense<0.000000e+00> : vector<8x128xf32>
    %56 = tpu.matmul %54, %55, %cst_29 {dimension_numbers = #tpu.dot_dimension_numbers<[1], [0], [0], [1], [0, 0, 1, 1], [], []>} : vector<8x128xbf16>, vector<128x128xbf16>, vector<8x128xf32> -> vector<8x128xf32>
    %c0_30 = arith.constant 0 : index
    %c0_31 = arith.constant 0 : index
    %57 = vector.load %arg9[%c0_30, %c0_31] : memref<1x128xf32, #tpu.memory_space<vmem>>, vector<1x128xf32>
    %58 = vector.broadcast %57 : vector<1x128xf32> to vector<8x128xf32>
    %59 = arith.addf %56, %58 : vector<8x128xf32>
    %c0_32 = arith.constant 0 : index
    %c0_33 = arith.constant 0 : index
    %c0_34 = arith.constant 0 : index
    %60 = vector.load %arg10[%c0_32, %c0_33, %c0_34] : memref<1x8x128xf32, #tpu.memory_space<vmem>>, vector<1x8x128xf32>
    %61 = vector.shape_cast %60 : vector<1x8x128xf32> to vector<8x128xf32>
    %62 = vector.shape_cast %59 : vector<8x128xf32> to vector<1x8x128xf32>
    tpu.vector_store %arg10[%c0_32, %c0_33, %c0_34], %62 {strides = array<i32>} : memref<1x8x128xf32, #tpu.memory_space<vmem>>, vector<1x8x128xf32>,
    return
  }
  func.func @transform_0(%arg0: i32) -> (i32, i32, i32) {
    %c0_i32 = arith.constant 0 : i32
    %c0_i32_0 = arith.constant 0 : i32
    %c0_i32_1 = arith.constant 0 : i32
    return %arg0, %c0_i32, %c0_i32_0 : i32, i32, i32
  }
  func.func @transform_1(%arg0: i32) -> (i32, i32) {
    %c0_i32 = arith.constant 0 : i32
    %c0_i32_0 = arith.constant 0 : i32
    %c0_i32_1 = arith.constant 0 : i32
    return %c0_i32, %c0_i32_0 : i32, i32
  }
  func.func @transform_2(%arg0: i32) -> (i32, i32) {
    %c0_i32 = arith.constant 0 : i32
    %c0_i32_0 = arith.constant 0 : i32
    %c0_i32_1 = arith.constant 0 : i32
    return %c0_i32, %c0_i32_0 : i32, i32
  }
  func.func @transform_3(%arg0: i32) -> (i32, i32) {
    %c0_i32 = arith.constant 0 : i32
    %c0_i32_0 = arith.constant 0 : i32
    %c0_i32_1 = arith.constant 0 : i32
    return %c0_i32, %c0_i32_0 : i32, i32
  }
  func.func @transform_4(%arg0: i32) -> (i32, i32) {
    %c0_i32 = arith.constant 0 : i32
    %c0_i32_0 = arith.constant 0 : i32
    %c0_i32_1 = arith.constant 0 : i32
    return %c0_i32, %c0_i32_0 : i32, i32
  }
  func.func @transform_5(%arg0: i32) -> (i32, i32) {
    %c0_i32 = arith.constant 0 : i32
    %c0_i32_0 = arith.constant 0 : i32
    %c0_i32_1 = arith.constant 0 : i32
    return %c0_i32, %c0_i32_0 : i32, i32
  }
  func.func @transform_6(%arg0: i32) -> (i32, i32) {
    %c0_i32 = arith.constant 0 : i32
    %c0_i32_0 = arith.constant 0 : i32
    %c0_i32_1 = arith.constant 0 : i32
    return %c0_i32, %c0_i32_0 : i32, i32
  }
  func.func @transform_7(%arg0: i32) -> (i32, i32) {
    %c0_i32 = arith.constant 0 : i32
    %c0_i32_0 = arith.constant 0 : i32
    %c0_i32_1 = arith.constant 0 : i32
    return %c0_i32, %c0_i32_0 : i32, i32
  }
  func.func @transform_8(%arg0: i32) -> (i32, i32) {
    %c0_i32 = arith.constant 0 : i32
    %c0_i32_0 = arith.constant 0 : i32
    %c0_i32_1 = arith.constant 0 : i32
    return %c0_i32, %c0_i32_0 : i32, i32
  }
  func.func @transform_9(%arg0: i32) -> (i32, i32, i32) {
    %c0_i32 = arith.constant 0 : i32
    %c0_i32_0 = arith.constant 0 : i32
    %c0_i32_1 = arith.constant 0 : i32
    return %arg0, %c0_i32, %c0_i32_0 : i32, i32, i32
  }
}

</mosaic_0001>

<llo_original>
// kernel: mlp_forward.1
$region0: #{mlp_forward.1}
  #allocation0 [shape = 'u32[]', space=smem, size = 0x4, offset = 0x4, fixed_abs, tag = 'smem constant byte address 0x4 - core index']
  #allocation1 [shape = 'u32[144,128]{1,0:T(1,128)}', space=vmem, size = 0x12000, scoped, tag = 'internal scratch']
  %s0 = inlined_call_operand.vmem [shape: f32[1,8,784], index: 0, kind: input, shape index: {}]
  %s1 = inlined_call_operand.vmem [shape: bf16[784,128], index: 1, kind: input, shape index: {}]
  %s2 = inlined_call_operand.vmem [shape: f32[1,128], index: 2, kind: input, shape index: {}]
  %s3 = inlined_call_operand.vmem [shape: f32[1,128], index: 3, kind: input, shape index: {}]
  %s4 = inlined_call_operand.vmem [shape: bf16[128,128], index: 4, kind: input, shape index: {}]
  %s5 = inlined_call_operand.vmem [shape: f32[1,128], index: 5, kind: input, shape index: {}]
  %s6 = inlined_call_operand.vmem [shape: f32[1,128], index: 6, kind: input, shape index: {}]
  %s7 = inlined_call_operand.vmem [shape: bf16[128,128], index: 7, kind: input, shape index: {}]
  %s8 = inlined_call_operand.vmem [shape: f32[1,128], index: 8, kind: input, shape index: {}]
  %s9 = inlined_call_operand.vmem [shape: f32[1,8,128], index: 9, kind: output, shape index: {}]
  %s10 = sld [smem:[#allocation0]]
  $region46: #{mlp_forward.1} parent=0
    _
  %s12 = ssub.s32 1, %s10
  %s13 = scalar_select 0, %s12, %s10
  // Predicated region
  $region2: #{mlp_forward.1} parent=0 // pred_check
    _
  $region3: #{mlp_forward.1} parent=0 // pred_check_branch
    %15 = sbr.rel (0) target = $region5
  $region4: #{mlp_forward.1} parent=0 // pred_region
    _
  $region5: #{mlp_forward.1} parent=0 // pred_fallthru
    _
  // Predicated region
  $region6: #{mlp_forward.1} parent=0 // pred_check
    _
  $region7: #{mlp_forward.1} parent=0 // pred_check_branch
    %17 = sbr.rel (0) target = $region9
  $region8: #{mlp_forward.1} parent=0 // pred_region
    _
  $region9: #{mlp_forward.1} parent=0 // pred_fallthru
    _
  // Predicated region
  $region10: #{mlp_forward.1} parent=0 // pred_check
    _
  $region11: #{mlp_forward.1} parent=0 // pred_check_branch
    %19 = sbr.rel (0) target = $region13
  $region12: #{mlp_forward.1} parent=0 // pred_region
    _
  $region13: #{mlp_forward.1} parent=0 // pred_fallthru
    _
  // Predicated region
  $region14: #{mlp_forward.1} parent=0 // pred_check
    _
  $region15: #{mlp_forward.1} parent=0 // pred_check_branch
    %21 = sbr.rel (0) target = $region17
  $region16: #{mlp_forward.1} parent=0 // pred_region
    _
  $region17: #{mlp_forward.1} parent=0 // pred_fallthru
    _
  // Predicated region
  $region18: #{mlp_forward.1} parent=0 // pred_check
    _
  $region19: #{mlp_forward.1} parent=0 // pred_check_branch
    %23 = sbr.rel (0) target = $region21
  $region20: #{mlp_forward.1} parent=0 // pred_region
    _
  $region21: #{mlp_forward.1} parent=0 // pred_fallthru
    _
  // Predicated region
  $region22: #{mlp_forward.1} parent=0 // pred_check
    _
  $region23: #{mlp_forward.1} parent=0 // pred_check_branch
    %25 = sbr.rel (0) target = $region25
  $region24: #{mlp_forward.1} parent=0 // pred_region
    _
  $region25: #{mlp_forward.1} parent=0 // pred_fallthru
    _
  // Predicated region
  $region26: #{mlp_forward.1} parent=0 // pred_check
    _
  $region27: #{mlp_forward.1} parent=0 // pred_check_branch
    %27 = sbr.rel (0) target = $region29
  $region28: #{mlp_forward.1} parent=0 // pred_region
    _
  $region29: #{mlp_forward.1} parent=0 // pred_fallthru
    _
  // Predicated region
  $region30: #{mlp_forward.1} parent=0 // pred_check
    _
  $region31: #{mlp_forward.1} parent=0 // pred_check_branch
    %29 = sbr.rel (0) target = $region33
  $region32: #{mlp_forward.1} parent=0 // pred_region
    _
  $region33: #{mlp_forward.1} parent=0 // pred_fallthru
    _
  // Predicated region
  $region34: #{mlp_forward.1} parent=0 // pred_check
    _
  $region35: #{mlp_forward.1} parent=0 // pred_check_branch
    %31 = sbr.rel (0) target = $region37
  $region36: #{mlp_forward.1} parent=0 // pred_region
    _
  $region37: #{mlp_forward.1} parent=0 // pred_fallthru
    _
  %v33 = vld [vmem:[%s0] sm:$0xff]
  %v34 = vld [vmem:[%s0 + $0x8] sm:$0xff]
  %v35 = vld [vmem:[%s0 + $0x10] sm:$0xff]
  %v36 = vld [vmem:[%s0 + $0x18] sm:$0xff]
  %v37 = vld [vmem:[%s0 + $0x20] sm:$0xff]
  %v38 = vld [vmem:[%s0 + $0x28] sm:$0xff]
  %v39 = vld [vmem:[%s0 + $0x30] sm:$0xff]
  %v40 = vpack.c.bf16 %v33, %v33
  %v41 = vpack.c.bf16 %v34, %v34
  %v42 = vpack.c.bf16 %v35, %v35
  %v43 = vpack.c.bf16 %v36, %v36
  %v44 = vpack.c.bf16 %v37, %v37
  %v45 = vpack.c.bf16 %v38, %v38
  %v46 = vpack.c.bf16 %v39, %v39
  %v47 = vld [vmem:[%s1] sm:$0xf]
  %v48 = vld [vmem:[%s1 + $0x4] sm:$0xf]
  %v49 = vld [vmem:[%s1 + $0x8] sm:$0xf]
  %v50 = vld [vmem:[%s1 + $0xc] sm:$0xf]
  %v51 = vld [vmem:[%s1 + $0x10] sm:$0xf]
  %v52 = vld [vmem:[%s1 + $0x14] sm:$0xf]
  %v53 = vld [vmem:[%s1 + $0x18] sm:$0xf]
  %v54 = vld [vmem:[%s1 + $0x1c] sm:$0xf]
  %v55 = vld [vmem:[%s1 + $0x20] sm:$0xf]
  %v56 = vld [vmem:[%s1 + $0x24] sm:$0xf]
  %v57 = vld [vmem:[%s1 + $0x28] sm:$0xf]
  %v58 = vld [vmem:[%s1 + $0x2c] sm:$0xf]
  %v59 = vld [vmem:[%s1 + $0x30] sm:$0xf]
  %v60 = vld [vmem:[%s1 + $0x34] sm:$0xf]
  %v61 = vld [vmem:[%s1 + $0x38] sm:$0xf]
  %v62 = vld [vmem:[%s1 + $0x3c] sm:$0xf]
  %v63 = vld [vmem:[%s1 + $0x40] sm:$0xf]
  %v64 = vld [vmem:[%s1 + $0x44] sm:$0xf]
  %v65 = vld [vmem:[%s1 + $0x48] sm:$0xf]
  %v66 = vld [vmem:[%s1 + $0x4c] sm:$0xf]
  %v67 = vld [vmem:[%s1 + $0x50] sm:$0xf]
  %v68 = vld [vmem:[%s1 + $0x54] sm:$0xf]
  %v69 = vld [vmem:[%s1 + $0x58] sm:$0xf]
  %v70 = vld [vmem:[%s1 + $0x5c] sm:$0xf]
  %v71 = vld [vmem:[%s1 + $0x60] sm:$0xf]
  %v72 = vld [vmem:[%s1 + $0x64] sm:$0xf]
  %v73 = vld [vmem:[%s1 + $0x68] sm:$0xf]
  %v74 = vld [vmem:[%s1 + $0x6c] sm:$0xf]
  %v75 = vld [vmem:[%s1 + $0x70] sm:$0xf]
  %v76 = vld [vmem:[%s1 + $0x74] sm:$0xf]
  %v77 = vld [vmem:[%s1 + $0x78] sm:$0xf]
  %v78 = vld [vmem:[%s1 + $0x7c] sm:$0xf]
  %v79 = vld [vmem:[%s1 + $0x80] sm:$0xf]
  %v80 = vld [vmem:[%s1 + $0x84] sm:$0xf]
  %v81 = vld [vmem:[%s1 + $0x88] sm:$0xf]
  %v82 = vld [vmem:[%s1 + $0x8c] sm:$0xf]
  %v83 = vld [vmem:[%s1 + $0x90] sm:$0xf]
  %v84 = vld [vmem:[%s1 + $0x94] sm:$0xf]
  %v85 = vld [vmem:[%s1 + $0x98] sm:$0xf]
  %v86 = vld [vmem:[%s1 + $0x9c] sm:$0xf]
  %v87 = vld [vmem:[%s1 + $0xa0] sm:$0xf]
  %v88 = vld [vmem:[%s1 + $0xa4] sm:$0xf]
  %v89 = vld [vmem:[%s1 + $0xa8] sm:$0xf]
  %v90 = vld [vmem:[%s1 + $0xac] sm:$0xf]
  %v91 = vld [vmem:[%s1 + $0xb0] sm:$0xf]
  %v92 = vld [vmem:[%s1 + $0xb4] sm:$0xf]
  %v93 = vld [vmem:[%s1 + $0xb8] sm:$0xf]
  %v94 = vld [vmem:[%s1 + $0xbc] sm:$0xf]
  %v95 = vld [vmem:[%s1 + $0xc0] sm:$0xf]
  %v96 = vld [vmem:[%s1 + $0xc4] sm:$0xf]
  %v97 = vld [vmem:[%s1 + $0xc8] sm:$0xf]
  %v98 = vld [vmem:[%s1 + $0xcc] sm:$0xf]
  %v99 = vld [vmem:[%s1 + $0xd0] sm:$0xf]
  %v100 = vld [vmem:[%s1 + $0xd4] sm:$0xf]
  %v101 = vld [vmem:[%s1 + $0xd8] sm:$0xf]
  %v102 = vld [vmem:[%s1 + $0xdc] sm:$0xf]
  %v103 = vld [vmem:[%s1 + $0xe0] sm:$0xf]
  %v104 = vld [vmem:[%s1 + $0xe4] sm:$0xf]
  %v105 = vld [vmem:[%s1 + $0xe8] sm:$0xf]
  %v106 = vld [vmem:[%s1 + $0xec] sm:$0xf]
  %v107 = vld [vmem:[%s1 + $0xf0] sm:$0xf]
  %v108 = vld [vmem:[%s1 + $0xf4] sm:$0xf]
  %v109 = vld [vmem:[%s1 + $0xf8] sm:$0xf]
  %v110 = vld [vmem:[%s1 + $0xfc] sm:$0xf]
  %v111 = vld [vmem:[%s1 + $0x100] sm:$0xf]
  %v112 = vld [vmem:[%s1 + $0x104] sm:$0xf]
  %v113 = vld [vmem:[%s1 + $0x108] sm:$0xf]
  %v114 = vld [vmem:[%s1 + $0x10c] sm:$0xf]
  %v115 = vld [vmem:[%s1 + $0x110] sm:$0xf]
  %v116 = vld [vmem:[%s1 + $0x114] sm:$0xf]
  %v117 = vld [vmem:[%s1 + $0x118] sm:$0xf]
  %v118 = vld [vmem:[%s1 + $0x11c] sm:$0xf]
  %v119 = vld [vmem:[%s1 + $0x120] sm:$0xf]
  %v120 = vld [vmem:[%s1 + $0x124] sm:$0xf]
  %v121 = vld [vmem:[%s1 + $0x128] sm:$0xf]
  %v122 = vld [vmem:[%s1 + $0x12c] sm:$0xf]
  %v123 = vld [vmem:[%s1 + $0x130] sm:$0xf]
  %v124 = vld [vmem:[%s1 + $0x134] sm:$0xf]
  %v125 = vld [vmem:[%s1 + $0x138] sm:$0xf]
  %v126 = vld [vmem:[%s1 + $0x13c] sm:$0xf]
  %v127 = vld [vmem:[%s1 + $0x140] sm:$0xf]
  %v128 = vld [vmem:[%s1 + $0x144] sm:$0xf]
  %v129 = vld [vmem:[%s1 + $0x148] sm:$0xf]
  %v130 = vld [vmem:[%s1 + $0x14c] sm:$0xf]
  %v131 = vld [vmem:[%s1 + $0x150] sm:$0xf]
  %v132 = vld [vmem:[%s1 + $0x154] sm:$0xf]
  %v133 = vld [vmem:[%s1 + $0x158] sm:$0xf]
  %v134 = vld [vmem:[%s1 + $0x15c] sm:$0xf]
  %v135 = vld [vmem:[%s1 + $0x160] sm:$0xf]
  %v136 = vld [vmem:[%s1 + $0x164] sm:$0xf]
  %v137 = vld [vmem:[%s1 + $0x168] sm:$0xf]
  %v138 = vld [vmem:[%s1 + $0x16c] sm:$0xf]
  %v139 = vld [vmem:[%s1 + $0x170] sm:$0xf]
  %v140 = vld [vmem:[%s1 + $0x174] sm:$0xf]
  %v141 = vld [vmem:[%s1 + $0x178] sm:$0xf]
  %v142 = vld [vmem:[%s1 + $0x17c] sm:$0xf]
  %v143 = vld [vmem:[%s1 + $0x180] sm:$0xf]
  %v144 = vld [vmem:[%s1 + $0x184] sm:$0xf]
  %v243 = vunpack.c.l.b16 %v47
  %v244 = vunpack.c.l.b16 %v48
  %v245 = vunpack.c.l.b16 %v49
  %v246 = vunpack.c.l.b16 %v50
  %v247 = vunpack.c.l.b16 %v51
  %v248 = vunpack.c.l.b16 %v52
  %v249 = vunpack.c.l.b16 %v53
  %v250 = vunpack.c.l.b16 %v54
  %v251 = vunpack.c.l.b16 %v55
  %v252 = vunpack.c.l.b16 %v56
  %v253 = vunpack.c.l.b16 %v57
  %v254 = vunpack.c.l.b16 %v58
  %v255 = vunpack.c.l.b16 %v59
  %v256 = vunpack.c.l.b16 %v60
  %v257 = vunpack.c.l.b16 %v61
  %v258 = vunpack.c.l.b16 %v62
  %v259 = vunpack.c.l.b16 %v63
  %v260 = vunpack.c.l.b16 %v64
  %v261 = vunpack.c.l.b16 %v65
  %v262 = vunpack.c.l.b16 %v66
  %v263 = vunpack.c.l.b16 %v67
  %v264 = vunpack.c.l.b16 %v68
  %v265 = vunpack.c.l.b16 %v69
  %v266 = vunpack.c.l.b16 %v70
  %v267 = vunpack.c.l.b16 %v71
  %v268 = vunpack.c.l.b16 %v72
  %v269 = vunpack.c.l.b16 %v73
  %v270 = vunpack.c.l.b16 %v74
  %v271 = vunpack.c.l.b16 %v75
  %v272 = vunpack.c.l.b16 %v76
  %v273 = vunpack.c.l.b16 %v77
  %v274 = vunpack.c.l.b16 %v78
  %v275 = vunpack.c.l.b16 %v79
  %v276 = vunpack.c.l.b16 %v80
  %v277 = vunpack.c.l.b16 %v81
  %v278 = vunpack.c.l.b16 %v82
  %v279 = vunpack.c.l.b16 %v83
  %v280 = vunpack.c.l.b16 %v84
  %v281 = vunpack.c.l.b16 %v85
  %v282 = vunpack.c.l.b16 %v86
  %v283 = vunpack.c.l.b16 %v87
  %v284 = vunpack.c.l.b16 %v88
  %v285 = vunpack.c.l.b16 %v89
  %v286 = vunpack.c.l.b16 %v90
  %v287 = vunpack.c.l.b16 %v91
  %v288 = vunpack.c.l.b16 %v92
  %v289 = vunpack.c.l.b16 %v93
  %v290 = vunpack.c.l.b16 %v94
  %v291 = vunpack.c.l.b16 %v95
  %v292 = vunpack.c.l.b16 %v96
  %v293 = vunpack.c.l.b16 %v97
  %v294 = vunpack.c.l.b16 %v98
  %v295 = vunpack.c.l.b16 %v99
  %v296 = vunpack.c.l.b16 %v100
  %v297 = vunpack.c.l.b16 %v101
  %v298 = vunpack.c.l.b16 %v102
  %v299 = vunpack.c.l.b16 %v103
  %v300 = vunpack.c.l.b16 %v104
  %v301 = vunpack.c.l.b16 %v105
  %v302 = vunpack.c.l.b16 %v106
  %v303 = vunpack.c.l.b16 %v107
  %v304 = vunpack.c.l.b16 %v108
  %v305 = vunpack.c.l.b16 %v109
  %v306 = vunpack.c.l.b16 %v110
  %v307 = vunpack.c.l.b16 %v111
  %v308 = vunpack.c.l.b16 %v112
  %v309 = vunpack.c.l.b16 %v113
  %v310 = vunpack.c.l.b16 %v114
  %v311 = vunpack.c.l.b16 %v115
  %v312 = vunpack.c.l.b16 %v116
  %v313 = vunpack.c.l.b16 %v117
  %v314 = vunpack.c.l.b16 %v118
  %v315 = vunpack.c.l.b16 %v119
  %v316 = vunpack.c.l.b16 %v120
  %v317 = vunpack.c.l.b16 %v121
  %v318 = vunpack.c.l.b16 %v122
  %v319 = vunpack.c.l.b16 %v123
  %v320 = vunpack.c.l.b16 %v124
  %v321 = vunpack.c.l.b16 %v125
  %v322 = vunpack.c.l.b16 %v126
  %v323 = vunpack.c.l.b16 %v127
  %v324 = vunpack.c.l.b16 %v128
  %v325 = vunpack.c.l.b16 %v129
  %v326 = vunpack.c.l.b16 %v130
  %v327 = vunpack.c.l.b16 %v131
  %v328 = vunpack.c.l.b16 %v132
  %v329 = vunpack.c.l.b16 %v133
  %v330 = vunpack.c.l.b16 %v134
  %v331 = vunpack.c.l.b16 %v135
  %v332 = vunpack.c.l.b16 %v136
  %v333 = vunpack.c.l.b16 %v137
  %v334 = vunpack.c.l.b16 %v138
  %v335 = vunpack.c.l.b16 %v139
  %v336 = vunpack.c.l.b16 %v140
  %v337 = vunpack.c.l.b16 %v141
  %v338 = vunpack.c.l.b16 %v142
  %v339 = vunpack.c.l.b16 %v143
  %v340 = vunpack.c.l.b16 %v144
  %v341 = vpack.c.b16 %v244, %v243
  %v342 = vpack.c.b16 %v246, %v245
  %v343 = vpack.c.b16 %v248, %v247
  %v344 = vpack.c.b16 %v250, %v249
  %v345 = vpack.c.b16 %v252, %v251
  %v346 = vpack.c.b16 %v254, %v253
  %v347 = vpack.c.b16 %v256, %v255
  %v348 = vpack.c.b16 %v258, %v257
  %v349 = vpack.c.b16 %v260, %v259
  %v350 = vpack.c.b16 %v262, %v261
  %v351 = vpack.c.b16 %v264, %v263
  %v352 = vpack.c.b16 %v266, %v265
  %v353 = vpack.c.b16 %v268, %v267
  %v354 = vpack.c.b16 %v270, %v269
  %v355 = vpack.c.b16 %v272, %v271
  %v356 = vpack.c.b16 %v274, %v273
  %v357 = vpack.c.b16 %v276, %v275
  %v358 = vpack.c.b16 %v278, %v277
  %v359 = vpack.c.b16 %v280, %v279
  %v360 = vpack.c.b16 %v282, %v281
  %v361 = vpack.c.b16 %v284, %v283
  %v362 = vpack.c.b16 %v286, %v285
  %v363 = vpack.c.b16 %v288, %v287
  %v364 = vpack.c.b16 %v290, %v289
  %v365 = vpack.c.b16 %v292, %v291
  %v366 = vpack.c.b16 %v294, %v293
  %v367 = vpack.c.b16 %v296, %v295
  %v368 = vpack.c.b16 %v298, %v297
  %v369 = vpack.c.b16 %v300, %v299
  %v370 = vpack.c.b16 %v302, %v301
  %v371 = vpack.c.b16 %v304, %v303
  %v372 = vpack.c.b16 %v306, %v305
  %v373 = vpack.c.b16 %v308, %v307
  %v374 = vpack.c.b16 %v310, %v309
  %v375 = vpack.c.b16 %v312, %v311
  %v376 = vpack.c.b16 %v314, %v313
  %v377 = vpack.c.b16 %v316, %v315
  %v378 = vpack.c.b16 %v318, %v317
  %v379 = vpack.c.b16 %v320, %v319
  %v380 = vpack.c.b16 %v322, %v321
  %v381 = vpack.c.b16 %v324, %v323
  %v382 = vpack.c.b16 %v326, %v325
  %v383 = vpack.c.b16 %v328, %v327
  %v384 = vpack.c.b16 %v330, %v329
  %v385 = vpack.c.b16 %v332, %v331
  %v386 = vpack.c.b16 %v334, %v333
  %v387 = vpack.c.b16 %v336, %v335
  %v388 = vpack.c.b16 %v338, %v337
  %v389 = vpack.c.b16 %v340, %v339
  %vm439 = vcmask 130048
  %v441 = vsel %vm439, %v46, 0
  %443 = vmatprep.subr.bf16.mxu0 0
  %444 = vmatpush1.bf16.msra.mxu0 %v348
  %445 = vmatprep.subr.bf16.mxu0 0
  %446 = vmatpush1.bf16.msra.mxu0 %v347
  %447 = vmatprep.subr.bf16.mxu0 0
  %448 = vmatpush1.bf16.msra.mxu0 %v346
  %449 = vmatprep.subr.bf16.mxu0 0
  %450 = vmatpush1.bf16.msra.mxu0 %v345
  %451 = vmatprep.subr.bf16.mxu0 0
  %452 = vmatpush1.bf16.msra.mxu0 %v344
  %453 = vmatprep.subr.bf16.mxu0 0
  %454 = vmatpush1.bf16.msra.mxu0 %v343
  %455 = vmatprep.subr.bf16.mxu0 0
  %456 = vmatpush1.bf16.msra.mxu0 %v342
  %457 = vmatprep.subr.bf16.mxu0 0
  %458 = vmatpush1.bf16.msra.mxu0 %v341
  %459 = vmatprep.subr.bf16.mxu0 0
  %460 = vmatpush2.bf16.msra.mxu0 %v356
  %461 = vmatprep.subr.bf16.mxu0 0
  %462 = vmatpush2.bf16.msra.mxu0 %v355
  %463 = vmatprep.subr.bf16.mxu0 0
  %464 = vmatpush2.bf16.msra.mxu0 %v354
  %465 = vmatprep.subr.bf16.mxu0 0
  %466 = vmatpush2.bf16.msra.mxu0 %v353
  %467 = vmatprep.subr.bf16.mxu0 0
  %468 = vmatpush2.bf16.msra.mxu0 %v352
  %469 = vmatprep.subr.bf16.mxu0 0
  %470 = vmatpush2.bf16.msra.mxu0 %v351
  %471 = vmatprep.subr.bf16.mxu0 0
  %472 = vmatpush2.bf16.msra.mxu0 %v350
  %473 = vmatprep.subr.bf16.mxu0 0
  %474 = vmatpush2.bf16.msra.mxu0 %v349
  %475 = vmatprep.mubr.bf16.mxu0 %v41
  %476 = vmatmul.mubr.bf16.gmra.mxu0 %v40
  %v477 = vpop.f32.mrf.mxu0
  %v478 = vadd.f32 0.0, %v477
  %v479 = vpop.f32.mrf.mxu0
  %v480 = vpop.f32.mrf.mxu0
  %v481 = vpop.f32.mrf.mxu0
  %482 = vdwg.mxu0
  %483 = vmatprep.subr.bf16.mxu0 0
  %484 = vmatpush1.bf16.msra.mxu0 %v364
  %485 = vmatprep.subr.bf16.mxu0 0
  %486 = vmatpush1.bf16.msra.mxu0 %v363
  %487 = vmatprep.subr.bf16.mxu0 0
  %488 = vmatpush1.bf16.msra.mxu0 %v362
  %489 = vmatprep.subr.bf16.mxu0 0
  %490 = vmatpush1.bf16.msra.mxu0 %v361
  %491 = vmatprep.subr.bf16.mxu0 0
  %492 = vmatpush1.bf16.msra.mxu0 %v360
  %493 = vmatprep.subr.bf16.mxu0 0
  %494 = vmatpush1.bf16.msra.mxu0 %v359
  %495 = vmatprep.subr.bf16.mxu0 0
  %496 = vmatpush1.bf16.msra.mxu0 %v358
  %497 = vmatprep.subr.bf16.mxu0 0
  %498 = vmatpush1.bf16.msra.mxu0 %v357
  %499 = vmatprep.subr.bf16.mxu0 0
  %500 = vmatpush2.bf16.msra.mxu0 %v372
  %501 = vmatprep.subr.bf16.mxu0 0
  %502 = vmatpush2.bf16.msra.mxu0 %v371
  %503 = vmatprep.subr.bf16.mxu0 0
  %504 = vmatpush2.bf16.msra.mxu0 %v370
  %505 = vmatprep.subr.bf16.mxu0 0
  %506 = vmatpush2.bf16.msra.mxu0 %v369
  %507 = vmatprep.subr.bf16.mxu0 0
  %508 = vmatpush2.bf16.msra.mxu0 %v368
  %509 = vmatprep.subr.bf16.mxu0 0
  %510 = vmatpush2.bf16.msra.mxu0 %v367
  %511 = vmatprep.subr.bf16.mxu0 0
  %512 = vmatpush2.bf16.msra.mxu0 %v366
  %513 = vmatprep.subr.bf16.mxu0 0
  %514 = vmatpush2.bf16.msra.mxu0 %v365
  %515 = vmatprep.mubr.bf16.mxu0 %v43
  %516 = vmatmul.mubr.bf16.gmra.mxu0 %v42
  %v517 = vpop.f32.mrf.mxu0
  %v518 = vadd.f32 %v478, %v517
  %v519 = vpop.f32.mrf.mxu0
  %v520 = vpop.f32.mrf.mxu0
  %v521 = vpop.f32.mrf.mxu0
  %522 = vdwg.mxu0
  %523 = vmatprep.subr.bf16.mxu0 0
  %524 = vmatpush1.bf16.msra.mxu0 %v380
  %525 = vmatprep.subr.bf16.mxu0 0
  %526 = vmatpush1.bf16.msra.mxu0 %v379
  %527 = vmatprep.subr.bf16.mxu0 0
  %528 = vmatpush1.bf16.msra.mxu0 %v378
  %529 = vmatprep.subr.bf16.mxu0 0
  %530 = vmatpush1.bf16.msra.mxu0 %v377
  %531 = vmatprep.subr.bf16.mxu0 0
  %532 = vmatpush1.bf16.msra.mxu0 %v376
  %533 = vmatprep.subr.bf16.mxu0 0
  %534 = vmatpush1.bf16.msra.mxu0 %v375
  %535 = vmatprep.subr.bf16.mxu0 0
  %536 = vmatpush1.bf16.msra.mxu0 %v374
  %537 = vmatprep.subr.bf16.mxu0 0
  %538 = vmatpush1.bf16.msra.mxu0 %v373
  %539 = vmatprep.subr.bf16.mxu0 0
  %540 = vmatpush2.bf16.msra.mxu0 %v388
  %541 = vmatprep.subr.bf16.mxu0 0
  %542 = vmatpush2.bf16.msra.mxu0 %v387
  %543 = vmatprep.subr.bf16.mxu0 0
  %544 = vmatpush2.bf16.msra.mxu0 %v386
  %545 = vmatprep.subr.bf16.mxu0 0
  %546 = vmatpush2.bf16.msra.mxu0 %v385
  %547 = vmatprep.subr.bf16.mxu0 0
  %548 = vmatpush2.bf16.msra.mxu0 %v384
  %549 = vmatprep.subr.bf16.mxu0 0
  %550 = vmatpush2.bf16.msra.mxu0 %v383
  %551 = vmatprep.subr.bf16.mxu0 0
  %552 = vmatpush2.bf16.msra.mxu0 %v382
  %553 = vmatprep.subr.bf16.mxu0 0
  %554 = vmatpush2.bf16.msra.mxu0 %v381
  %555 = vmatprep.mubr.bf16.mxu0 %v45
  %556 = vmatmul.mubr.bf16.gmra.mxu0 %v44
  %v557 = vpop.f32.mrf.mxu0
  %v558 = vadd.f32 %v518, %v557
  %v559 = vpop.f32.mrf.mxu0
  %v560 = vpop.f32.mrf.mxu0
  %v561 = vpop.f32.mrf.mxu0
  %562 = vdwg.mxu0
  %563 = vmatprep.subr.bf16.mxu0 0
  %564 = vmatpush1.bf16.msra.mxu0 0
  %565 = vmatprep.subr.bf16.mxu0 0
  %566 = vmatpush1.bf16.msra.mxu0 0
  %567 = vmatprep.subr.bf16.mxu0 0
  %568 = vmatpush1.bf16.msra.mxu0 0
  %569 = vmatprep.subr.bf16.mxu0 0
  %570 = vmatpush1.bf16.msra.mxu0 0
  %571 = vmatprep.subr.bf16.mxu0 0
  %572 = vmatpush1.bf16.msra.mxu0 0
  %573 = vmatprep.subr.bf16.mxu0 0
  %574 = vmatpush1.bf16.msra.mxu0 0
  %575 = vmatprep.subr.bf16.mxu0 0
  %576 = vmatpush1.bf16.msra.mxu0 0
  %577 = vmatprep.subr.bf16.mxu0 0
  %578 = vmatpush1.bf16.msra.mxu0 %v389
  %579 = vmatprep.subr.bf16.mxu0 0
  %580 = vmatpush2.bf16.msra.mxu0 0
  %581 = vmatprep.subr.bf16.mxu0 0
  %582 = vmatpush2.bf16.msra.mxu0 0
  %583 = vmatprep.subr.bf16.mxu0 0
  %584 = vmatpush2.bf16.msra.mxu0 0
  %585 = vmatprep.subr.bf16.mxu0 0
  %586 = vmatpush2.bf16.msra.mxu0 0
  %587 = vmatprep.subr.bf16.mxu0 0
  %588 = vmatpush2.bf16.msra.mxu0 0
  %589 = vmatprep.subr.bf16.mxu0 0
  %590 = vmatpush2.bf16.msra.mxu0 0
  %591 = vmatprep.subr.bf16.mxu0 0
  %592 = vmatpush2.bf16.msra.mxu0 0
  %593 = vmatprep.subr.bf16.mxu0 0
  %594 = vmatpush2.bf16.msra.mxu0 0
  %595 = vmatprep.mubr.bf16.mxu0 0
  %596 = vmatmul.mubr.bf16.gmra.mxu0 %v441
  %v597 = vpop.f32.mrf.mxu0
  %v598 = vadd.f32 %v558, %v597
  %v599 = vpop.f32.mrf.mxu0
  %v600 = vpop.f32.mrf.mxu0
  %v601 = vpop.f32.mrf.mxu0
  %602 = vdwg.mxu0
  %v603 = vrot.slane %v598, 4
  %v604 = vadd.f32 %v598, %v603
  %v605 = vrot.slane %v604, 2
  %v606 = vadd.f32 %v604, %v605
  %v607 = vrot.slane %v606, 1
  %v608 = vadd.f32 %v606, %v607
  %v609 = vmul.f32 %v608, 0.125
  %v610 = vsub.f32 %v598, %v609
  %v611 = vmul.f32 %v610, %v610
  %v612 = vrot.slane %v611, 4
  %v613 = vadd.f32 %v611, %v612
  %v614 = vrot.slane %v613, 2
  %v615 = vadd.f32 %v613, %v614
  %v616 = vrot.slane %v615, 1
  %v617 = vadd.f32 %v615, %v616
  %v618 = vmul.f32 %v617, 0.125
  %v619 = vld [vmem:[%s2] sm:$0x1]
  %v620 = vadd.f32 %v618, 1e-05
  %v621 = vrsqrt.pop %v620
  %v622 = vmul.f32 %v619, %v621
  %v624 = vlaneseq
  %v625 = vshrl.u32 %v624, 7
  %v626 = vsub.s32 0, %v625
  %v627 = vrot.slane %v622, %v626
  %v629 = vmul.f32 %v610, %v627
  %v630 = vld [vmem:[%s3] sm:$0x1]
  %v632 = vlaneseq
  %v633 = vshrl.u32 %v632, 7
  %v634 = vsub.s32 0, %v633
  %v635 = vrot.slane %v630, %v634
  %v637 = vadd.f32 %v629, %v635
  %v638 = vmax.f32 %v637, 0.0
  %v639 = vpack.c.bf16 %v638, %v638
  %v640 = vld [vmem:[%s4] sm:$0xf]
  %v641 = vld [vmem:[%s4 + $0x4] sm:$0xf]
  %v642 = vld [vmem:[%s4 + $0x8] sm:$0xf]
  %v643 = vld [vmem:[%s4 + $0xc] sm:$0xf]
  %v644 = vld [vmem:[%s4 + $0x10] sm:$0xf]
  %v645 = vld [vmem:[%s4 + $0x14] sm:$0xf]
  %v646 = vld [vmem:[%s4 + $0x18] sm:$0xf]
  %v647 = vld [vmem:[%s4 + $0x1c] sm:$0xf]
  %v648 = vld [vmem:[%s4 + $0x20] sm:$0xf]
  %v649 = vld [vmem:[%s4 + $0x24] sm:$0xf]
  %v650 = vld [vmem:[%s4 + $0x28] sm:$0xf]
  %v651 = vld [vmem:[%s4 + $0x2c] sm:$0xf]
  %v652 = vld [vmem:[%s4 + $0x30] sm:$0xf]
  %v653 = vld [vmem:[%s4 + $0x34] sm:$0xf]
  %v654 = vld [vmem:[%s4 + $0x38] sm:$0xf]
  %v655 = vld [vmem:[%s4 + $0x3c] sm:$0xf]
  %v672 = vunpack.c.l.b16 %v640
  %v673 = vunpack.c.l.b16 %v641
  %v674 = vunpack.c.l.b16 %v642
  %v675 = vunpack.c.l.b16 %v643
  %v676 = vunpack.c.l.b16 %v644
  %v677 = vunpack.c.l.b16 %v645
  %v678 = vunpack.c.l.b16 %v646
  %v679 = vunpack.c.l.b16 %v647
  %v680 = vunpack.c.l.b16 %v648
  %v681 = vunpack.c.l.b16 %v649
  %v682 = vunpack.c.l.b16 %v650
  %v683 = vunpack.c.l.b16 %v651
  %v684 = vunpack.c.l.b16 %v652
  %v685 = vunpack.c.l.b16 %v653
  %v686 = vunpack.c.l.b16 %v654
  %v687 = vunpack.c.l.b16 %v655
  %v688 = vpack.c.b16 %v673, %v672
  %v689 = vpack.c.b16 %v675, %v674
  %v690 = vpack.c.b16 %v677, %v676
  %v691 = vpack.c.b16 %v679, %v678
  %v692 = vpack.c.b16 %v681, %v680
  %v693 = vpack.c.b16 %v683, %v682
  %v694 = vpack.c.b16 %v685, %v684
  %v695 = vpack.c.b16 %v687, %v686
  %704 = vmatprep.subr.bf16.mxu0 0
  %705 = vmatpush1.bf16.msra.mxu0 %v695
  %706 = vmatprep.subr.bf16.mxu0 0
  %707 = vmatpush1.bf16.msra.mxu0 %v694
  %708 = vmatprep.subr.bf16.mxu0 0
  %709 = vmatpush1.bf16.msra.mxu0 %v693
  %710 = vmatprep.subr.bf16.mxu0 0
  %711 = vmatpush1.bf16.msra.mxu0 %v692
  %712 = vmatprep.subr.bf16.mxu0 0
  %713 = vmatpush1.bf16.msra.mxu0 %v691
  %714 = vmatprep.subr.bf16.mxu0 0
  %715 = vmatpush1.bf16.msra.mxu0 %v690
  %716 = vmatprep.subr.bf16.mxu0 0
  %717 = vmatpush1.bf16.msra.mxu0 %v689
  %718 = vmatprep.subr.bf16.mxu0 0
  %719 = vmatpush1.bf16.msra.mxu0 %v688
  %720 = vmatprep.subr.bf16.mxu0 0
  %721 = vmatpush2.bf16.msra.mxu0 0
  %722 = vmatprep.subr.bf16.mxu0 0
  %723 = vmatpush2.bf16.msra.mxu0 0
  %724 = vmatprep.subr.bf16.mxu0 0
  %725 = vmatpush2.bf16.msra.mxu0 0
  %726 = vmatprep.subr.bf16.mxu0 0
  %727 = vmatpush2.bf16.msra.mxu0 0
  %728 = vmatprep.subr.bf16.mxu0 0
  %729 = vmatpush2.bf16.msra.mxu0 0
  %730 = vmatprep.subr.bf16.mxu0 0
  %731 = vmatpush2.bf16.msra.mxu0 0
  %732 = vmatprep.subr.bf16.mxu0 0
  %733 = vmatpush2.bf16.msra.mxu0 0
  %734 = vmatprep.subr.bf16.mxu0 0
  %735 = vmatpush2.bf16.msra.mxu0 0
  %736 = vmatprep.mubr.bf16.mxu0 0
  %737 = vmatmul.mubr.bf16.gmra.mxu0 %v639
  %v738 = vpop.f32.mrf.mxu0
  %v739 = vadd.f32 0.0, %v738
  %v740 = vpop.f32.mrf.mxu0
  %v741 = vpop.f32.mrf.mxu0
  %v742 = vpop.f32.mrf.mxu0
  %743 = vdwg.mxu0
  %v744 = vrot.slane %v739, 4
  %v745 = vadd.f32 %v739, %v744
  %v746 = vrot.slane %v745, 2
  %v747 = vadd.f32 %v745, %v746
  %v748 = vrot.slane %v747, 1
  %v749 = vadd.f32 %v747, %v748
  %v750 = vmul.f32 %v749, 0.125
  %v751 = vsub.f32 %v739, %v750
  %v752 = vmul.f32 %v751, %v751
  %v753 = vrot.slane %v752, 4
  %v754 = vadd.f32 %v752, %v753
  %v755 = vrot.slane %v754, 2
  %v756 = vadd.f32 %v754, %v755
  %v757 = vrot.slane %v756, 1
  %v758 = vadd.f32 %v756, %v757
  %v759 = vmul.f32 %v758, 0.125
  %v760 = vld [vmem:[%s5] sm:$0x1]
  %v761 = vadd.f32 %v759, 1e-05
  %v762 = vrsqrt.pop %v761
  %v763 = vmul.f32 %v760, %v762
  %v765 = vlaneseq
  %v766 = vshrl.u32 %v765, 7
  %v767 = vsub.s32 0, %v766
  %v768 = vrot.slane %v763, %v767
  %v770 = vmul.f32 %v751, %v768
  %v771 = vld [vmem:[%s6] sm:$0x1]
  %v773 = vlaneseq
  %v774 = vshrl.u32 %v773, 7
  %v775 = vsub.s32 0, %v774
  %v776 = vrot.slane %v771, %v775
  %v778 = vadd.f32 %v770, %v776
  %v779 = vmax.f32 %v778, 0.0
  %v780 = vpack.c.bf16 %v779, %v779
  %v781 = vld [vmem:[%s7] sm:$0xf]
  %v782 = vld [vmem:[%s7 + $0x4] sm:$0xf]
  %v783 = vld [vmem:[%s7 + $0x8] sm:$0xf]
  %v784 = vld [vmem:[%s7 + $0xc] sm:$0xf]
  %v785 = vld [vmem:[%s7 + $0x10] sm:$0xf]
  %v786 = vld [vmem:[%s7 + $0x14] sm:$0xf]
  %v787 = vld [vmem:[%s7 + $0x18] sm:$0xf]
  %v788 = vld [vmem:[%s7 + $0x1c] sm:$0xf]
  %v789 = vld [vmem:[%s7 + $0x20] sm:$0xf]
  %v790 = vld [vmem:[%s7 + $0x24] sm:$0xf]
  %v791 = vld [vmem:[%s7 + $0x28] sm:$0xf]
  %v792 = vld [vmem:[%s7 + $0x2c] sm:$0xf]
  %v793 = vld [vmem:[%s7 + $0x30] sm:$0xf]
  %v794 = vld [vmem:[%s7 + $0x34] sm:$0xf]
  %v795 = vld [vmem:[%s7 + $0x38] sm:$0xf]
  %v796 = vld [vmem:[%s7 + $0x3c] sm:$0xf]
  %v797 = vld [vmem:[%s8] sm:$0x1]
  %v799 = vlaneseq
  %v800 = vshrl.u32 %v799, 7
  %v801 = vsub.s32 0, %v800
  %v802 = vrot.slane %v797, %v801
  %v820 = vunpack.c.l.b16 %v781
  %v821 = vunpack.c.l.b16 %v782
  %v822 = vunpack.c.l.b16 %v783
  %v823 = vunpack.c.l.b16 %v784
  %v824 = vunpack.c.l.b16 %v785
  %v825 = vunpack.c.l.b16 %v786
  %v826 = vunpack.c.l.b16 %v787
  %v827 = vunpack.c.l.b16 %v788
  %v828 = vunpack.c.l.b16 %v789
  %v829 = vunpack.c.l.b16 %v790
  %v830 = vunpack.c.l.b16 %v791
  %v831 = vunpack.c.l.b16 %v792
  %v832 = vunpack.c.l.b16 %v793
  %v833 = vunpack.c.l.b16 %v794
  %v834 = vunpack.c.l.b16 %v795
  %v835 = vunpack.c.l.b16 %v796
  %v836 = vpack.c.b16 %v821, %v820
  %v837 = vpack.c.b16 %v823, %v822
  %v838 = vpack.c.b16 %v825, %v824
  %v839 = vpack.c.b16 %v827, %v826
  %v840 = vpack.c.b16 %v829, %v828
  %v841 = vpack.c.b16 %v831, %v830
  %v842 = vpack.c.b16 %v833, %v832
  %v843 = vpack.c.b16 %v835, %v834
  %852 = vmatprep.subr.bf16.mxu0 0
  %853 = vmatpush1.bf16.msra.mxu0 %v843
  %854 = vmatprep.subr.bf16.mxu0 0
  %855 = vmatpush1.bf16.msra.mxu0 %v842
  %856 = vmatprep.subr.bf16.mxu0 0
  %857 = vmatpush1.bf16.msra.mxu0 %v841
  %858 = vmatprep.subr.bf16.mxu0 0
  %859 = vmatpush1.bf16.msra.mxu0 %v840
  %860 = vmatprep.subr.bf16.mxu0 0
  %861 = vmatpush1.bf16.msra.mxu0 %v839
  %862 = vmatprep.subr.bf16.mxu0 0
  %863 = vmatpush1.bf16.msra.mxu0 %v838
  %864 = vmatprep.subr.bf16.mxu0 0
  %865 = vmatpush1.bf16.msra.mxu0 %v837
  %866 = vmatprep.subr.bf16.mxu0 0
  %867 = vmatpush1.bf16.msra.mxu0 %v836
  %868 = vmatprep.subr.bf16.mxu0 0
  %869 = vmatpush2.bf16.msra.mxu0 0
  %870 = vmatprep.subr.bf16.mxu0 0
  %871 = vmatpush2.bf16.msra.mxu0 0
  %872 = vmatprep.subr.bf16.mxu0 0
  %873 = vmatpush2.bf16.msra.mxu0 0
  %874 = vmatprep.subr.bf16.mxu0 0
  %875 = vmatpush2.bf16.msra.mxu0 0
  %876 = vmatprep.subr.bf16.mxu0 0
  %877 = vmatpush2.bf16.msra.mxu0 0
  %878 = vmatprep.subr.bf16.mxu0 0
  %879 = vmatpush2.bf16.msra.mxu0 0
  %880 = vmatprep.subr.bf16.mxu0 0
  %881 = vmatpush2.bf16.msra.mxu0 0
  %882 = vmatprep.subr.bf16.mxu0 0
  %883 = vmatpush2.bf16.msra.mxu0 0
  %884 = vmatprep.mubr.bf16.mxu0 0
  %885 = vmatmul.mubr.bf16.gmra.mxu0 %v780
  %v886 = vpop.f32.mrf.mxu0
  %v887 = vadd.f32 %v802, %v886
  %v888 = vpop.f32.mrf.mxu0
  %v889 = vpop.f32.mrf.mxu0
  %v890 = vpop.f32.mrf.mxu0
  %891 = vdwg.mxu0
  %892 = vst [vmem:[%s9] sm:$0xff] %v887
  // Predicated region
  $region38: #{mlp_forward.1} parent=0 // pred_check
    _
  $region39: #{mlp_forward.1} parent=0 // pred_check_branch
    %894 = sbr.rel (0) target = $region41
  $region40: #{mlp_forward.1} parent=0 // pred_region
    _
  $region41: #{mlp_forward.1} parent=0 // pred_fallthru
    _
  // Predicated region
  $region42: #{mlp_forward.1} parent=0 // pred_check
    _
  $region43: #{mlp_forward.1} parent=0 // pred_check_branch
    %896 = sbr.rel (0) target = $region45
  $region44: #{mlp_forward.1} parent=0 // pred_region
    _
  $region45: #{mlp_forward.1} parent=0 // pred_fallthru
    _

</llo_original>
